<compile_context>
chip_gen: v6e
topology: v6e:2x2x1
jax: 0.10.0
libtpu: 0.0.40
codegen_flags: <defaults>
</compile_context>

<pallas_src>
import functools

import jax
import jax.numpy as jnp
from jax import lax
from jax.experimental import pallas as pl
from jax.experimental.pallas import tpu as pltpu

_LANE = 128  # lane width; also the per-tile bin-slab width


def _round_up(x, m):
    return ((x + m - 1) // m) * m


def _ece_tile_kernel(probs_ref, labels_ref, out_ref, *, n_bins, n_valid, tile_n):
    """Partial ECE statistics for one tile of `tile_n` samples.

    probs_ref:  (tile_n, C) in the input's native dtype (samples on sublanes).
    labels_ref: (tile_n, 1) int32.
    out_ref:    (1, 3, 128) f32 — rows: [count, sum_conf, sum_acc] per bin.
    """
    i = pl.program_id(0)
    probs = probs_ref[...].astype(jnp.float32)   # cast after the DMA (native dtype on HBM)
    labels = labels_ref[...]                     # (tile_n, 1) int32
    tn, c = probs.shape

    # confidences, predictions = torch.max(probs, 1)   (first-index tie-break)
    conf = jnp.max(probs, axis=1, keepdims=True)                       # (tn, 1)
    col = lax.broadcasted_iota(jnp.int32, (tn, c), 1)
    pred = jnp.min(jnp.where(probs == conf, col, c), axis=1, keepdims=True)
    acc = (pred == labels).astype(jnp.float32)                          # (tn, 1)

    # Ragged tail: rows past n_valid hold undefined data (no wrapper padding
    # was materialized).  Mask them: conf == 0 lands in no bin (bin 0 needs
    # conf > 0), so masked rows contribute nothing downstream.
    row = lax.broadcasted_iota(jnp.int32, (tn, 1), 0)
    valid = (i * tile_n + row) < n_valid
    conf = jnp.where(valid, conf, 0.0)
    acc = jnp.where(valid, acc, 0.0)

    # Bin membership, lanes = bins:  in_bin[n, b] = lower_b < conf[n] <= upper_b.
    # Boundaries computed in-kernel from an iota (no boundary DMAs).
    b = lax.broadcasted_iota(jnp.int32, (1, n_bins), 1).astype(jnp.float32)
    inv = jnp.float32(1.0 / n_bins)
    in_bin = ((conf > b * inv) & (conf <= (b + 1.0) * inv)).astype(jnp.float32)

    # Per-tile partials: reductions over the sample (sublane) axis.
    # (An MXU dot_general contracting the sample axis is an alternative if the
    #  VPU ever binds; at these bin widths the reductions are a small fraction
    #  of the per-sample max/argmax cost above.)
    count = jnp.sum(in_bin, axis=0, keepdims=True)                      # (1, B)
    sum_conf = jnp.sum(in_bin * conf, axis=0, keepdims=True)            # (1, B)
    sum_acc = jnp.sum(in_bin * acc, axis=0, keepdims=True)              # (1, B)

    # Pre-zeroed lane-padded slab, then write the n_bins valid lanes.
    out_ref[...] = jnp.zeros_like(out_ref)
    out_ref[0, 0:1, :n_bins] = count
    out_ref[0, 1:2, :n_bins] = sum_conf
    out_ref[0, 2:3, :n_bins] = sum_acc


def _vmem_capacity_bytes():
    try:
        info = pltpu.get_tpu_info()
        cap = int(getattr(info, "vmem_capacity_bytes", 0))
        if cap > 0:
            return cap
    except Exception:
        pass
    return 64 * 1024 * 1024  # conservative fallback (v7x physical VMEM)


def _choose_tile_n(n, c, itemsize, vmem_cap):
    """Samples per grid step.

    Fill ~half of this generation's VMEM with the double-buffered input blocks
    (multi-MiB DMAs amortize the ~0.35 us/step pipeline overhead), never tile
    far past the data, and keep >= 2 grid steps on large inputs so v7x's two
    TensorCores both get work.
    """
    budget = vmem_cap // 2  # ~64 MiB on v5e/v6e, ~32 MiB on v7x
    # Double-buffered VMEM bytes per sample row:
    #   probs block : lane dim padded up to a multiple of 128
    #   labels block: (tn, 1) int32 pads its minor dim to 128 lanes
    per_row = 2 * _round_up(c, _LANE) * itemsize + 2 * _LANE * 4
    # TODO(synk): for very large C (per-row footprint ~MiB) also tile the class
    # axis; ECE inputs in practice have C <= a few thousand.
    tn = max(64, (budget // per_row) // 64 * 64)
    tn = min(tn, _round_up(n, 64))                    # don't tile far past the data
    if n >= 1024:
        tn = min(tn, _round_up(-(-n // 2), 64))       # >= 2 steps when it matters
    return tn


def ece_loss(probs, labels, n_bins=15, tile_n=None):
    """Pallas ECE.  probs: (N, C) float (any float dtype), labels: (N,) int.

    Returns a (1,)-shaped float32 array, matching the PyTorch module's output.
    """
    n, c = probs.shape
    assert n_bins <= _LANE, "n_bins must fit in the 128-lane stats slab"

    vmem_cap = _vmem_capacity_bytes()
    if tile_n is None:
        tile_n = _choose_tile_n(n, c, probs.dtype.itemsize, vmem_cap)
    else:
        tile_n = max(64, _round_up(tile_n, 64))
    num_tiles = -(-n // tile_n)  # cdiv

    # Only free layout tweaks here: no transpose / pad / dtype cast of probs.
    labels2d = labels.astype(jnp.int32).reshape(n, 1)

    kernel = functools.partial(
        _ece_tile_kernel, n_bins=n_bins, n_valid=n, tile_n=tile_n)

    # Per-tile partials (kept even on single-TC v5e/v6e: the partials array and
    # its epilogue reduce are tiny at these tile sizes, and they let the grid
    # split across v7x's two TensorCores).
    partials = pl.pallas_call(
        kernel,
        out_shape=jax.ShapeDtypeStruct((num_tiles, 3, _LANE), jnp.float32),
        grid=(num_tiles,),
        in_specs=[
            pl.BlockSpec((tile_n, c), lambda i: (i, 0)),
            pl.BlockSpec((tile_n, 1), lambda i: (i, 0)),
        ],
        out_specs=pl.BlockSpec((1, 3, _LANE), lambda i: (i, 0, 0)),
        compiler_params=pltpu.CompilerParams(
            dimension_semantics=("parallel",),
            vmem_limit_bytes=int(vmem_cap * 3 // 4),
        ),
    )(probs, labels2d)

    # Tiny pure-JAX epilogue: combine per-tile partials and finalize.
    # Counts are exact: each per-tile count <= tile_n << 2^24, combined in int32.
    # TODO(synk): for > ~2^24 samples per bin, also accumulate sum_conf/sum_acc
    # in higher precision (pairwise / f64) here; per-tile partials are fine.
    count = jnp.sum(partials[:, 0, :n_bins].astype(jnp.int32), axis=0)   # (B,)
    sums = jnp.sum(partials[:, 1:3, :n_bins], axis=0)                    # (2, B)
    sum_conf, sum_acc = sums[0], sums[1]

    count_f = count.astype(jnp.float32)
    prop_in_bin = count_f / jnp.float32(n)
    safe = jnp.maximum(count_f, 1.0)
    gap = jnp.abs(sum_conf - sum_acc) / safe * prop_in_bin
    ece = jnp.sum(jnp.where(count > 0, gap, 0.0))
    return ece.reshape(1)


class ECELoss:
    """Forward-pass analogue of the PyTorch ECELoss module."""

    def __init__(self, n_bins=15):
        self.n_bins = n_bins

    def __call__(self, probs, labels):
        return ece_loss(probs, labels, n_bins=self.n_bins)


def _ece_ref(probs, labels, n_bins=15):
    """Pure-JAX reference mirroring the PyTorch loop (same bin boundaries)."""
    probs = probs.astype(jnp.float32)
    conf = jnp.max(probs, axis=1)
    pred = jnp.argmax(probs, axis=1)
    acc = (pred == labels).astype(jnp.float32)
    inv = jnp.float32(1.0 / n_bins)
    n = probs.shape[0]
    ece = jnp.zeros((1,), jnp.float32)
    for j in range(n_bins):
        lo, up = j * inv, (j + 1) * inv
        in_bin = (conf > lo) & (conf <= up)
        cnt = jnp.sum(in_bin.astype(jnp.float32))
        prop = cnt / n
        safe = jnp.maximum(cnt, 1.0)
        avg_conf = jnp.sum(jnp.where(in_bin, conf, 0.0)) / safe
        acc_bin = jnp.sum(jnp.where(in_bin, acc, 0.0)) / safe
        ece = ece + jnp.where(cnt > 0, jnp.abs(avg_conf - acc_bin) * prop, 0.0)
    return ece


if __name__ == "__main__":
    key = jax.random.PRNGKey(0)
    k1, k2, k3, k4, k5, k6 = jax.random.split(key, 6)

    # Case 1: small f32 input, single tile, adaptive tile size.
    N1, C1 = 64, 10
    probs1 = jax.nn.softmax(jax.random.normal(k1, (N1, C1), jnp.float32), axis=1)
    labels1 = jax.random.randint(k2, (N1,), 0, C1, dtype=jnp.int32)
    out1 = ece_loss(probs1, labels1, n_bins=15)
    jax.block_until_ready(out1)
    ref1 = _ece_ref(probs1, labels1, n_bins=15)
    assert out1.shape == (1,)
    assert jnp.allclose(out1, ref1, atol=2e-5), (out1, ref1)

    # Case 2: multiple tiles + ragged tail (forced small tile exercises the
    # parallel grid and the in-kernel tail masking: 300 = 128 + 128 + 44).
    N2, C2 = 300, 7
    probs2 = jax.nn.softmax(jax.random.normal(k3, (N2, C2), jnp.float32), axis=1)
    labels2 = jax.random.randint(k4, (N2,), 0, C2, dtype=jnp.int32)
    out2 = ece_loss(probs2, labels2, n_bins=15, tile_n=128)
    jax.block_until_ready(out2)
    ref2 = _ece_ref(probs2, labels2, n_bins=15)
    assert jnp.allclose(out2, ref2, atol=2e-5), (out2, ref2)

    # Case 3: native bf16 probs (no wrapper upcast) + ragged single tile.
    N3, C3 = 200, 5
    probs3 = jax.nn.softmax(
        jax.random.normal(k5, (N3, C3), jnp.float32), axis=1).astype(jnp.bfloat16)
    labels3 = jax.random.randint(k6, (N3,), 0, C3, dtype=jnp.int32)
    out3 = ECELoss(n_bins=15)(probs3, labels3)
    jax.block_until_ready(out3)
    ref3 = _ece_ref(probs3, labels3, n_bins=15)
    assert jnp.allclose(out3, ref3, atol=2e-5), (out3, ref3)

    print("KERNEL_OK")
</pallas_src>

<mosaic_0001>
module attributes {stable_mosaic.version = 11 : i64} {
  func.func @_ece_tile_kernel(%arg0: i32, %arg1: memref<64x10xf32, #tpu.memory_space<vmem>>, %arg2: memref<64x1xi32, #tpu.memory_space<vmem>>, %arg3: memref<1x3x128xf32, #tpu.memory_space<vmem>>) attributes {dimension_semantics = [#tpu.dimension_semantics<parallel>], iteration_bounds = array<i64: 1>, scalar_prefetch = 0 : i64, scratch_operands = 0 : i64, tpu.core_type = #tpu.core_type<tc>, window_params = [{transform_indices = @transform_0, window_bounds = array<i64: 64, 10>}, {transform_indices = @transform_1, window_bounds = array<i64: 64, 1>}, {transform_indices = @transform_2, window_bounds = array<i64: 1, 3, 128>}]} {
    %c0 = arith.constant 0 : index
    %c0_0 = arith.constant 0 : index
    %0 = vector.load %arg1[%c0, %c0_0] : memref<64x10xf32, #tpu.memory_space<vmem>>, vector<64x10xf32>
    %c0_1 = arith.constant 0 : index
    %c0_2 = arith.constant 0 : index
    %1 = vector.load %arg2[%c0_1, %c0_2] : memref<64x1xi32, #tpu.memory_space<vmem>>, vector<64x1xi32>
    %cst = arith.constant dense<0xFF800000> : vector<64xf32>
    %2 = vector.multi_reduction <maximumf>, %0, %cst [1] : vector<64x10xf32> to vector<64xf32>
    %3 = vector.shape_cast %2 : vector<64xf32> to vector<64x1xf32>
    %4 = tpu.iota {dimensions = array<i32: 1>} : vector<64x10xi32>
    %5 = vector.broadcast %3 : vector<64x1xf32> to vector<64x10xf32>
    %6 = arith.cmpf oeq, %0, %5 : vector<64x10xf32>
    %c10_i32 = arith.constant 10 : i32
    %7 = vector.broadcast %c10_i32 : i32 to vector<64x10xi32>
    %8 = arith.select %6, %4, %7 : vector<64x10xi1>, vector<64x10xi32>
    %cst_3 = arith.constant dense<2147483647> : vector<64xi32>
    %9 = vector.multi_reduction <minsi>, %8, %cst_3 [1] : vector<64x10xi32> to vector<64xi32>
    %10 = vector.shape_cast %9 : vector<64xi32> to vector<64x1xi32>
    %11 = arith.cmpi eq, %10, %1 : vector<64x1xi32>
    %12 = arith.extui %11 : vector<64x1xi1> to vector<64x1xi32>
    %13 = arith.sitofp %12 : vector<64x1xi32> to vector<64x1xf32>
    %14 = tpu.iota {dimensions = array<i32: 0>} : vector<64x1xi32>
    %c64_i32 = arith.constant 64 : i32
    %15 = arith.muli %arg0, %c64_i32 : i32
    %16 = vector.broadcast %15 : i32 to vector<64x1xi32>
    %17 = arith.addi %16, %14 : vector<64x1xi32>
    %c64_i32_4 = arith.constant 64 : i32
    %18 = vector.broadcast %c64_i32_4 : i32 to vector<64x1xi32>
    %19 = arith.cmpi slt, %17, %18 : vector<64x1xi32>
    %cst_5 = arith.constant 0.000000e+00 : f32
    %20 = vector.broadcast %cst_5 : f32 to vector<64x1xf32>
    %21 = arith.select %19, %3, %20 : vector<64x1xi1>, vector<64x1xf32>
    %cst_6 = arith.constant 0.000000e+00 : f32
    %22 = vector.broadcast %cst_6 : f32 to vector<64x1xf32>
    %23 = arith.select %19, %13, %22 : vector<64x1xi1>, vector<64x1xf32>
    %24 = tpu.iota {dimensions = array<i32: 1>} : vector<1x15xi32>
    %25 = arith.sitofp %24 : vector<1x15xi32> to vector<1x15xf32>
    %cst_7 = arith.constant 0.0666666701 : f32
    %26 = vector.broadcast %cst_7 : f32 to vector<1x15xf32>
    %27 = arith.mulf %25, %26 : vector<1x15xf32>
    %28 = vector.broadcast %21 : vector<64x1xf32> to vector<64x15xf32>
    %29 = vector.broadcast %27 : vector<1x15xf32> to vector<64x15xf32>
    %30 = arith.cmpf ogt, %28, %29 : vector<64x15xf32>
    %cst_8 = arith.constant 1.000000e+00 : f32
    %31 = vector.broadcast %cst_8 : f32 to vector<1x15xf32>
    %32 = arith.addf %25, %31 : vector<1x15xf32>
    %cst_9 = arith.constant 0.0666666701 : f32
    %33 = vector.broadcast %cst_9 : f32 to vector<1x15xf32>
    %34 = arith.mulf %32, %33 : vector<1x15xf32>
    %35 = vector.broadcast %21 : vector<64x1xf32> to vector<64x15xf32>
    %36 = vector.broadcast %34 : vector<1x15xf32> to vector<64x15xf32>
    %37 = arith.cmpf ole, %35, %36 : vector<64x15xf32>
    %38 = arith.andi %30, %37 : vector<64x15xi1>
    %39 = arith.extui %38 : vector<64x15xi1> to vector<64x15xi32>
    %40 = arith.sitofp %39 : vector<64x15xi32> to vector<64x15xf32>
    %cst_10 = arith.constant dense<0.000000e+00> : vector<15xf32>
    %41 = vector.multi_reduction <add>, %40, %cst_10 [0] : vector<64x15xf32> to vector<15xf32>
    %42 = vector.shape_cast %41 : vector<15xf32> to vector<1x15xf32>
    %43 = vector.broadcast %21 : vector<64x1xf32> to vector<64x15xf32>
    %44 = arith.mulf %40, %43 : vector<64x15xf32>
    %cst_11 = arith.constant dense<0.000000e+00> : vector<15xf32>
    %45 = vector.multi_reduction <add>, %44, %cst_11 [0] : vector<64x15xf32> to vector<15xf32>
    %46 = vector.shape_cast %45 : vector<15xf32> to vector<1x15xf32>
    %47 = vector.broadcast %23 : vector<64x1xf32> to vector<64x15xf32>
    %48 = arith.mulf %40, %47 : vector<64x15xf32>
    %cst_12 = arith.constant dense<0.000000e+00> : vector<15xf32>
    %49 = vector.multi_reduction <add>, %48, %cst_12 [0] : vector<64x15xf32> to vector<15xf32>
    %50 = vector.shape_cast %49 : vector<15xf32> to vector<1x15xf32>
    %cst_13 = arith.constant 0.000000e+00 : f32
    %51 = vector.broadcast %cst_13 : f32 to vector<1x3x128xf32>
    %c0_14 = arith.constant 0 : index
    %c0_15 = arith.constant 0 : index
    %c0_16 = arith.constant 0 : index
    %52 = vector.load %arg3[%c0_14, %c0_15, %c0_16] : memref<1x3x128xf32, #tpu.memory_space<vmem>>, vector<1x3x128xf32>
    tpu.vector_store %arg3[%c0_14, %c0_15, %c0_16], %51 {strides = array<i32>} : memref<1x3x128xf32, #tpu.memory_space<vmem>>, vector<1x3x128xf32>,
    %c0_17 = arith.constant 0 : index
    %c0_18 = arith.constant 0 : index
    %c0_19 = arith.constant 0 : index
    %53 = vector.load %arg3[%c0_17, %c0_18, %c0_19] : memref<1x3x128xf32, #tpu.memory_space<vmem>>, vector<1x1x15xf32>
    %54 = vector.shape_cast %53 : vector<1x1x15xf32> to vector<1x15xf32>
    %55 = vector.shape_cast %42 : vector<1x15xf32> to vector<1x1x15xf32>
    tpu.vector_store %arg3[%c0_17, %c0_18, %c0_19], %55 {strides = array<i32>} : memref<1x3x128xf32, #tpu.memory_space<vmem>>, vector<1x1x15xf32>,
    %c0_20 = arith.constant 0 : index
    %c1 = arith.constant 1 : index
    %c0_21 = arith.constant 0 : index
    %56 = vector.load %arg3[%c0_20, %c1, %c0_21] : memref<1x3x128xf32, #tpu.memory_space<vmem>>, vector<1x1x15xf32>
    %57 = vector.shape_cast %56 : vector<1x1x15xf32> to vector<1x15xf32>
    %58 = vector.shape_cast %46 : vector<1x15xf32> to vector<1x1x15xf32>
    tpu.vector_store %arg3[%c0_20, %c1, %c0_21], %58 {strides = array<i32>} : memref<1x3x128xf32, #tpu.memory_space<vmem>>, vector<1x1x15xf32>,
    %c0_22 = arith.constant 0 : index
    %c2 = arith.constant 2 : index
    %c0_23 = arith.constant 0 : index
    %59 = vector.load %arg3[%c0_22, %c2, %c0_23] : memref<1x3x128xf32, #tpu.memory_space<vmem>>, vector<1x1x15xf32>
    %60 = vector.shape_cast %59 : vector<1x1x15xf32> to vector<1x15xf32>
    %61 = vector.shape_cast %50 : vector<1x15xf32> to vector<1x1x15xf32>
    tpu.vector_store %arg3[%c0_22, %c2, %c0_23], %61 {strides = array<i32>} : memref<1x3x128xf32, #tpu.memory_space<vmem>>, vector<1x1x15xf32>,
    return
  }
  func.func @transform_0(%arg0: i32) -> (i32, i32) {
    %c0_i32 = arith.constant 0 : i32
    %c0_i32_0 = arith.constant 0 : i32
    return %arg0, %c0_i32 : i32, i32
  }
  func.func @transform_1(%arg0: i32) -> (i32, i32) {
    %c0_i32 = arith.constant 0 : i32
    %c0_i32_0 = arith.constant 0 : i32
    return %arg0, %c0_i32 : i32, i32
  }
  func.func @transform_2(%arg0: i32) -> (i32, i32, i32) {
    %c0_i32 = arith.constant 0 : i32
    %c0_i32_0 = arith.constant 0 : i32
    %c0_i32_1 = arith.constant 0 : i32
    return %arg0, %c0_i32, %c0_i32_0 : i32, i32, i32
  }
}

</mosaic_0001>

<llo_original>
// kernel: tpu_custom_call.1
$region0: #{tpu_custom_call.1}
  #allocation0 [shape = 'u32[]', space=smem, size = 0x4, offset = 0x4, fixed_abs, tag = 'smem constant byte address 0x4 - core index']
  #allocation1 [shape = 'u32[144,128]{1,0:T(1,128)}', space=vmem, size = 0x12000, scoped, tag = 'internal scratch']
  %s0 = inlined_call_operand.vmem [shape: f32[64,10], index: 0, kind: input, shape index: {}]
  %s1 = inlined_call_operand.vmem [shape: s32[64,1], index: 1, kind: input, shape index: {}]
  %s2 = inlined_call_operand.vmem [shape: f32[1,3,128], index: 2, kind: output, shape index: {}]
  %s3 = sld [smem:[#allocation0]]
  $region18: #{tpu_custom_call.1} parent=0
    _
  %s5 = ssub.s32 1, %s3
  %s6 = scalar_select 0, %s5, %s3
  // Predicated region
  $region2: #{tpu_custom_call.1} parent=0 // pred_check
    _
  $region3: #{tpu_custom_call.1} parent=0 // pred_check_branch
    %8 = sbr.rel (0) target = $region5
  $region4: #{tpu_custom_call.1} parent=0 // pred_region
    _
  $region5: #{tpu_custom_call.1} parent=0 // pred_fallthru
    _
  // Predicated region
  $region6: #{tpu_custom_call.1} parent=0 // pred_check
    _
  $region7: #{tpu_custom_call.1} parent=0 // pred_check_branch
    %10 = sbr.rel (0) target = $region9
  $region8: #{tpu_custom_call.1} parent=0 // pred_region
    _
  $region9: #{tpu_custom_call.1} parent=0 // pred_fallthru
    _
  %v11 = vld [vmem:[%s0] sm:$0xff]
  %v12 = vld [vmem:[%s0 + $0x8] sm:$0xff]
  %v13 = vld [vmem:[%s0 + $0x10] sm:$0xff]
  %v14 = vld [vmem:[%s0 + $0x18] sm:$0xff]
  %v15 = vld [vmem:[%s0 + $0x20] sm:$0xff]
  %v16 = vld [vmem:[%s0 + $0x28] sm:$0xff]
  %v17 = vld [vmem:[%s0 + $0x30] sm:$0xff]
  %v18 = vld [vmem:[%s0 + $0x38] sm:$0xff]
  %v19 = vld [vmem:[%s1] sm:$0xff]
  %v20 = vld [vmem:[%s1 + $0x8] sm:$0xff]
  %v21 = vld [vmem:[%s1 + $0x10] sm:$0xff]
  %v22 = vld [vmem:[%s1 + $0x18] sm:$0xff]
  %v23 = vld [vmem:[%s1 + $0x20] sm:$0xff]
  %v24 = vld [vmem:[%s1 + $0x28] sm:$0xff]
  %v25 = vld [vmem:[%s1 + $0x30] sm:$0xff]
  %v26 = vld [vmem:[%s1 + $0x38] sm:$0xff]
  %vm27 = vcmask 80896
  %v28 = vsel %vm27, %v11, -inf
  %29 = vmax.xlane.f32.xlu0 %v28
  %v30 = vpop.xlane.xlu0 %29
  %v31 = vsel %vm27, %v12, -inf
  %32 = vmax.xlane.f32.xlu0 %v31
  %v33 = vpop.xlane.xlu0 %32
  %v34 = vsel %vm27, %v13, -inf
  %35 = vmax.xlane.f32.xlu0 %v34
  %v36 = vpop.xlane.xlu0 %35
  %v37 = vsel %vm27, %v14, -inf
  %38 = vmax.xlane.f32.xlu0 %v37
  %v39 = vpop.xlane.xlu0 %38
  %v40 = vsel %vm27, %v15, -inf
  %41 = vmax.xlane.f32.xlu0 %v40
  %v42 = vpop.xlane.xlu0 %41
  %v43 = vsel %vm27, %v16, -inf
  %44 = vmax.xlane.f32.xlu0 %v43
  %v45 = vpop.xlane.xlu0 %44
  %v46 = vsel %vm27, %v17, -inf
  %47 = vmax.xlane.f32.xlu0 %v46
  %v48 = vpop.xlane.xlu0 %47
  %v49 = vsel %vm27, %v18, -inf
  %50 = vmax.xlane.f32.xlu0 %v49
  %v51 = vpop.xlane.xlu0 %50
  %v52 = vlaneseq
  %v53 = vand.u32 %v52, 127
  %vm54 = vcmp.eq.f32.partialorder %v11, %v30
  %vm55 = vcmp.eq.f32.partialorder %v12, %v33
  %vm56 = vcmp.eq.f32.partialorder %v13, %v36
  %vm57 = vcmp.eq.f32.partialorder %v14, %v39
  %vm58 = vcmp.eq.f32.partialorder %v15, %v42
  %vm59 = vcmp.eq.f32.partialorder %v16, %v45
  %vm60 = vcmp.eq.f32.partialorder %v17, %v48
  %vm61 = vcmp.eq.f32.partialorder %v18, %v51
  %v62 = vsel %vm54, %v53, 10
  %v63 = vsel %vm55, %v53, 10
  %v64 = vsel %vm56, %v53, 10
  %v65 = vsel %vm57, %v53, 10
  %v66 = vsel %vm58, %v53, 10
  %v67 = vsel %vm59, %v53, 10
  %v68 = vsel %vm60, %v53, 10
  %v69 = vsel %vm61, %v53, 10
  %v70 = vsel %vm27, %v62, 2147483647
  %v71 = vand.u32 %v70, 65535
  %v72 = vshra.s32 %v70, 16
  %v73 = vcvt.s32.f32 %v71
  %v74 = vcvt.s32.f32 %v72
  %75 = vmin.xlane.f32.xlu0 %v74
  %v76 = vpop.xlane.xlu0 %75
  %vm77 = vcmp.eq.f32.partialorder %v74, %v76
  %v78 = vsel %vm77, %v73, inf
  %79 = vmin.xlane.f32.xlu0 %v78
  %v80 = vpop.xlane.xlu0 %79
  %v81 = vcvt.f32.s32 %v80
  %v82 = vcvt.f32.s32 %v76
  %v83 = vshll.u32 %v82, 16
  %v84 = vadd.s32 %v83, %v81
  %v85 = vsel %vm27, %v63, 2147483647
  %v86 = vand.u32 %v85, 65535
  %v87 = vshra.s32 %v85, 16
  %v88 = vcvt.s32.f32 %v86
  %v89 = vcvt.s32.f32 %v87
  %90 = vmin.xlane.f32.xlu0 %v89
  %v91 = vpop.xlane.xlu0 %90
  %vm92 = vcmp.eq.f32.partialorder %v89, %v91
  %v93 = vsel %vm92, %v88, inf
  %94 = vmin.xlane.f32.xlu0 %v93
  %v95 = vpop.xlane.xlu0 %94
  %v96 = vcvt.f32.s32 %v95
  %v97 = vcvt.f32.s32 %v91
  %v98 = vshll.u32 %v97, 16
  %v99 = vadd.s32 %v98, %v96
  %v100 = vsel %vm27, %v64, 2147483647
  %v101 = vand.u32 %v100, 65535
  %v102 = vshra.s32 %v100, 16
  %v103 = vcvt.s32.f32 %v101
  %v104 = vcvt.s32.f32 %v102
  %105 = vmin.xlane.f32.xlu0 %v104
  %v106 = vpop.xlane.xlu0 %105
  %vm107 = vcmp.eq.f32.partialorder %v104, %v106
  %v108 = vsel %vm107, %v103, inf
  %109 = vmin.xlane.f32.xlu0 %v108
  %v110 = vpop.xlane.xlu0 %109
  %v111 = vcvt.f32.s32 %v110
  %v112 = vcvt.f32.s32 %v106
  %v113 = vshll.u32 %v112, 16
  %v114 = vadd.s32 %v113, %v111
  %v115 = vsel %vm27, %v65, 2147483647
  %v116 = vand.u32 %v115, 65535
  %v117 = vshra.s32 %v115, 16
  %v118 = vcvt.s32.f32 %v116
  %v119 = vcvt.s32.f32 %v117
  %120 = vmin.xlane.f32.xlu0 %v119
  %v121 = vpop.xlane.xlu0 %120
  %vm122 = vcmp.eq.f32.partialorder %v119, %v121
  %v123 = vsel %vm122, %v118, inf
  %124 = vmin.xlane.f32.xlu0 %v123
  %v125 = vpop.xlane.xlu0 %124
  %v126 = vcvt.f32.s32 %v125
  %v127 = vcvt.f32.s32 %v121
  %v128 = vshll.u32 %v127, 16
  %v129 = vadd.s32 %v128, %v126
  %v130 = vsel %vm27, %v66, 2147483647
  %v131 = vand.u32 %v130, 65535
  %v132 = vshra.s32 %v130, 16
  %v133 = vcvt.s32.f32 %v131
  %v134 = vcvt.s32.f32 %v132
  %135 = vmin.xlane.f32.xlu0 %v134
  %v136 = vpop.xlane.xlu0 %135
  %vm137 = vcmp.eq.f32.partialorder %v134, %v136
  %v138 = vsel %vm137, %v133, inf
  %139 = vmin.xlane.f32.xlu0 %v138
  %v140 = vpop.xlane.xlu0 %139
  %v141 = vcvt.f32.s32 %v140
  %v142 = vcvt.f32.s32 %v136
  %v143 = vshll.u32 %v142, 16
  %v144 = vadd.s32 %v143, %v141
  %v145 = vsel %vm27, %v67, 2147483647
  %v146 = vand.u32 %v145, 65535
  %v147 = vshra.s32 %v145, 16
  %v148 = vcvt.s32.f32 %v146
  %v149 = vcvt.s32.f32 %v147
  %150 = vmin.xlane.f32.xlu0 %v149
  %v151 = vpop.xlane.xlu0 %150
  %vm152 = vcmp.eq.f32.partialorder %v149, %v151
  %v153 = vsel %vm152, %v148, inf
  %154 = vmin.xlane.f32.xlu0 %v153
  %v155 = vpop.xlane.xlu0 %154
  %v156 = vcvt.f32.s32 %v155
  %v157 = vcvt.f32.s32 %v151
  %v158 = vshll.u32 %v157, 16
  %v159 = vadd.s32 %v158, %v156
  %v160 = vsel %vm27, %v68, 2147483647
  %v161 = vand.u32 %v160, 65535
  %v162 = vshra.s32 %v160, 16
  %v163 = vcvt.s32.f32 %v161
  %v164 = vcvt.s32.f32 %v162
  %165 = vmin.xlane.f32.xlu0 %v164
  %v166 = vpop.xlane.xlu0 %165
  %vm167 = vcmp.eq.f32.partialorder %v164, %v166
  %v168 = vsel %vm167, %v163, inf
  %169 = vmin.xlane.f32.xlu0 %v168
  %v170 = vpop.xlane.xlu0 %169
  %v171 = vcvt.f32.s32 %v170
  %v172 = vcvt.f32.s32 %v166
  %v173 = vshll.u32 %v172, 16
  %v174 = vadd.s32 %v173, %v171
  %v175 = vsel %vm27, %v69, 2147483647
  %v176 = vand.u32 %v175, 65535
  %v177 = vshra.s32 %v175, 16
  %v178 = vcvt.s32.f32 %v176
  %v179 = vcvt.s32.f32 %v177
  %180 = vmin.xlane.f32.xlu0 %v179
  %v181 = vpop.xlane.xlu0 %180
  %vm182 = vcmp.eq.f32.partialorder %v179, %v181
  %v183 = vsel %vm182, %v178, inf
  %184 = vmin.xlane.f32.xlu0 %v183
  %v185 = vpop.xlane.xlu0 %184
  %v186 = vcvt.f32.s32 %v185
  %v187 = vcvt.f32.s32 %v181
  %v188 = vshll.u32 %v187, 16
  %v189 = vadd.s32 %v188, %v186
  %vm190 = vcmp.eq.s32.totalorder %v84, %v19
  %vm191 = vcmp.eq.s32.totalorder %v99, %v20
  %vm192 = vcmp.eq.s32.totalorder %v114, %v21
  %vm193 = vcmp.eq.s32.totalorder %v129, %v22
  %vm194 = vcmp.eq.s32.totalorder %v144, %v23
  %vm195 = vcmp.eq.s32.totalorder %v159, %v24
  %vm196 = vcmp.eq.s32.totalorder %v174, %v25
  %vm197 = vcmp.eq.s32.totalorder %v189, %v26
  %v198 = vsel %vm190, 1, 0
  %v199 = vsel %vm191, 1, 0
  %v200 = vsel %vm192, 1, 0
  %v201 = vsel %vm193, 1, 0
  %v202 = vsel %vm194, 1, 0
  %v203 = vsel %vm195, 1, 0
  %v204 = vsel %vm196, 1, 0
  %v205 = vsel %vm197, 1, 0
  %v206 = vcvt.s32.f32 %v198
  %v207 = vcvt.s32.f32 %v199
  %v208 = vcvt.s32.f32 %v200
  %v209 = vcvt.s32.f32 %v201
  %v210 = vcvt.s32.f32 %v202
  %v211 = vcvt.s32.f32 %v203
  %v212 = vcvt.s32.f32 %v204
  %v213 = vcvt.s32.f32 %v205
  %v214 = vlaneseq
  %v215 = vshrl.u32 %v214, 7
  %v216 = vadd.s32 %v215, 8
  %v217 = vadd.s32 %v215, 16
  %v218 = vadd.s32 %v215, 24
  %v219 = vadd.s32 %v215, 32
  %v220 = vadd.s32 %v215, 40
  %v221 = vadd.s32 %v215, 48
  %v222 = vadd.s32 %v215, 56
  %s223 = smul.u32 0, 64
  %v224 = vstv %s223
  %v225 = vadd.s32 %v224, %v215
  %v226 = vadd.s32 %v224, %v216
  %v227 = vadd.s32 %v224, %v217
  %v228 = vadd.s32 %v224, %v218
  %v229 = vadd.s32 %v224, %v219
  %v230 = vadd.s32 %v224, %v220
  %v231 = vadd.s32 %v224, %v221
  %v232 = vadd.s32 %v224, %v222
  %vm233 = vcmp.lt.s32.totalorder %v225, 64
  %vm234 = vcmp.lt.s32.totalorder %v226, 64
  %vm235 = vcmp.lt.s32.totalorder %v227, 64
  %vm236 = vcmp.lt.s32.totalorder %v228, 64
  %vm237 = vcmp.lt.s32.totalorder %v229, 64
  %vm238 = vcmp.lt.s32.totalorder %v230, 64
  %vm239 = vcmp.lt.s32.totalorder %v231, 64
  %vm240 = vcmp.lt.s32.totalorder %v232, 64
  %v241 = vsel %vm233, %v30, 0.0
  %v242 = vsel %vm234, %v33, 0.0
  %v243 = vsel %vm235, %v36, 0.0
  %v244 = vsel %vm236, %v39, 0.0
  %v245 = vsel %vm237, %v42, 0.0
  %v246 = vsel %vm238, %v45, 0.0
  %v247 = vsel %vm239, %v48, 0.0
  %v248 = vsel %vm240, %v51, 0.0
  %v249 = vsel %vm233, %v206, 0.0
  %v250 = vsel %vm234, %v207, 0.0
  %v251 = vsel %vm235, %v208, 0.0
  %v252 = vsel %vm236, %v209, 0.0
  %v253 = vsel %vm237, %v210, 0.0
  %v254 = vsel %vm238, %v211, 0.0
  %v255 = vsel %vm239, %v212, 0.0
  %v256 = vsel %vm240, %v213, 0.0
  %v257 = vcvt.s32.f32 %v53
  %v258 = vmul.f32 %v257, 0.06666667
  %vm259 = vcmp.gt.f32.partialorder %v241, %v258
  %vm260 = vcmp.gt.f32.partialorder %v242, %v258
  %vm261 = vcmp.gt.f32.partialorder %v243, %v258
  %vm262 = vcmp.gt.f32.partialorder %v244, %v258
  %vm263 = vcmp.gt.f32.partialorder %v245, %v258
  %vm264 = vcmp.gt.f32.partialorder %v246, %v258
  %vm265 = vcmp.gt.f32.partialorder %v247, %v258
  %vm266 = vcmp.gt.f32.partialorder %v248, %v258
  %v267 = vadd.f32 %v257, 1.0
  %v268 = vmul.f32 %v267, 0.06666667
  %vm269 = vcmp.le.f32.partialorder %v241, %v268
  %vm270 = vcmp.le.f32.partialorder %v242, %v268
  %vm271 = vcmp.le.f32.partialorder %v243, %v268
  %vm272 = vcmp.le.f32.partialorder %v244, %v268
  %vm273 = vcmp.le.f32.partialorder %v245, %v268
  %vm274 = vcmp.le.f32.partialorder %v246, %v268
  %vm275 = vcmp.le.f32.partialorder %v247, %v268
  %vm276 = vcmp.le.f32.partialorder %v248, %v268
  %vm277 = vmand %vm259, %vm269
  %vm278 = vmand %vm260, %vm270
  %vm279 = vmand %vm261, %vm271
  %vm280 = vmand %vm262, %vm272
  %vm281 = vmand %vm263, %vm273
  %vm282 = vmand %vm264, %vm274
  %vm283 = vmand %vm265, %vm275
  %vm284 = vmand %vm266, %vm276
  %v285 = vsel %vm277, 1, 0
  %v286 = vsel %vm278, 1, 0
  %v287 = vsel %vm279, 1, 0
  %v288 = vsel %vm280, 1, 0
  %v289 = vsel %vm281, 1, 0
  %v290 = vsel %vm282, 1, 0
  %v291 = vsel %vm283, 1, 0
  %v292 = vsel %vm284, 1, 0
  %v293 = vcvt.s32.f32 %v285
  %v294 = vcvt.s32.f32 %v286
  %v295 = vcvt.s32.f32 %v287
  %v296 = vcvt.s32.f32 %v288
  %v297 = vcvt.s32.f32 %v289
  %v298 = vcvt.s32.f32 %v290
  %v299 = vcvt.s32.f32 %v291
  %v300 = vcvt.s32.f32 %v292
  %vm301 = vcmask 121856
  %v302 = vsel %vm301, %v293, 0.0
  %v303 = vsel %vm301, %v294, 0.0
  %v304 = vadd.f32 %v302, %v303
  %v305 = vsel %vm301, %v295, 0.0
  %v306 = vadd.f32 %v304, %v305
  %v307 = vsel %vm301, %v296, 0.0
  %v308 = vadd.f32 %v306, %v307
  %v309 = vsel %vm301, %v297, 0.0
  %v310 = vadd.f32 %v308, %v309
  %v311 = vsel %vm301, %v298, 0.0
  %v312 = vadd.f32 %v310, %v311
  %v313 = vsel %vm301, %v299, 0.0
  %v314 = vadd.f32 %v312, %v313
  %v315 = vsel %vm301, %v300, 0.0
  %v316 = vadd.f32 %v314, %v315
  %v317 = vrot.slane %v316, 4
  %v318 = vadd.f32 %v316, %v317
  %v319 = vrot.slane %v318, 2
  %v320 = vadd.f32 %v318, %v319
  %v321 = vrot.slane %v320, 1
  %v322 = vadd.f32 %v320, %v321
  %v323 = vmul.f32 %v293, %v241
  %v324 = vmul.f32 %v294, %v242
  %v325 = vmul.f32 %v295, %v243
  %v326 = vmul.f32 %v296, %v244
  %v327 = vmul.f32 %v297, %v245
  %v328 = vmul.f32 %v298, %v246
  %v329 = vmul.f32 %v299, %v247
  %v330 = vmul.f32 %v300, %v248
  %v331 = vsel %vm301, %v323, 0.0
  %v332 = vsel %vm301, %v324, 0.0
  %v333 = vadd.f32 %v331, %v332
  %v334 = vsel %vm301, %v325, 0.0
  %v335 = vadd.f32 %v333, %v334
  %v336 = vsel %vm301, %v326, 0.0
  %v337 = vadd.f32 %v335, %v336
  %v338 = vsel %vm301, %v327, 0.0
  %v339 = vadd.f32 %v337, %v338
  %v340 = vsel %vm301, %v328, 0.0
  %v341 = vadd.f32 %v339, %v340
  %v342 = vsel %vm301, %v329, 0.0
  %v343 = vadd.f32 %v341, %v342
  %v344 = vsel %vm301, %v330, 0.0
  %v345 = vadd.f32 %v343, %v344
  %v346 = vrot.slane %v345, 4
  %v347 = vadd.f32 %v345, %v346
  %v348 = vrot.slane %v347, 2
  %v349 = vadd.f32 %v347, %v348
  %v350 = vrot.slane %v349, 1
  %v351 = vadd.f32 %v349, %v350
  %353 = vset.pattern.permute.xlu0 0
  %354 = vperm.xlu0 %353, %v249
  %v355 = vpop.permute.xlu0 %354
  %358 = vset.pattern.permute.xlu0 0
  %359 = vperm.xlu0 %358, %v250
  %v360 = vpop.permute.xlu0 %359
  %363 = vset.pattern.permute.xlu0 0
  %364 = vperm.xlu0 %363, %v251
  %v365 = vpop.permute.xlu0 %364
  %368 = vset.pattern.permute.xlu0 0
  %369 = vperm.xlu0 %368, %v252
  %v370 = vpop.permute.xlu0 %369
  %373 = vset.pattern.permute.xlu0 0
  %374 = vperm.xlu0 %373, %v253
  %v375 = vpop.permute.xlu0 %374
  %378 = vset.pattern.permute.xlu0 0
  %379 = vperm.xlu0 %378, %v254
  %v380 = vpop.permute.xlu0 %379
  %383 = vset.pattern.permute.xlu0 0
  %384 = vperm.xlu0 %383, %v255
  %v385 = vpop.permute.xlu0 %384
  %388 = vset.pattern.permute.xlu0 0
  %389 = vperm.xlu0 %388, %v256
  %v390 = vpop.permute.xlu0 %389
  %v392 = vmul.f32 %v293, %v355
  %v393 = vmul.f32 %v294, %v360
  %v394 = vmul.f32 %v295, %v365
  %v395 = vmul.f32 %v296, %v370
  %v396 = vmul.f32 %v297, %v375
  %v397 = vmul.f32 %v298, %v380
  %v398 = vmul.f32 %v299, %v385
  %v399 = vmul.f32 %v300, %v390
  %v400 = vsel %vm301, %v392, 0.0
  %v401 = vsel %vm301, %v393, 0.0
  %v402 = vadd.f32 %v400, %v401
  %v403 = vsel %vm301, %v394, 0.0
  %v404 = vadd.f32 %v402, %v403
  %v405 = vsel %vm301, %v395, 0.0
  %v406 = vadd.f32 %v404, %v405
  %v407 = vsel %vm301, %v396, 0.0
  %v408 = vadd.f32 %v406, %v407
  %v409 = vsel %vm301, %v397, 0.0
  %v410 = vadd.f32 %v408, %v409
  %v411 = vsel %vm301, %v398, 0.0
  %v412 = vadd.f32 %v410, %v411
  %v413 = vsel %vm301, %v399, 0.0
  %v414 = vadd.f32 %v412, %v413
  %v415 = vrot.slane %v414, 4
  %v416 = vadd.f32 %v414, %v415
  %v417 = vrot.slane %v416, 2
  %v418 = vadd.f32 %v416, %v417
  %v419 = vrot.slane %v418, 1
  %v420 = vadd.f32 %v418, %v419
  %421 = vst [vmem:[%s2] sm:$0x7] 0.0
  %vm422 = vcmask 114688
  %423 = vst.msk [vmem:[%s2] sm:$0x1] %vm422, %v322
  %424 = vst.msk [vmem:[%s2 + $0x1] sm:$0x1] %vm422, %v351
  %425 = vst.msk [vmem:[%s2 + $0x2] sm:$0x1] %vm422, %v420
  // Predicated region
  $region10: #{tpu_custom_call.1} parent=0 // pred_check
    _
  $region11: #{tpu_custom_call.1} parent=0 // pred_check_branch
    %427 = sbr.rel (0) target = $region13
  $region12: #{tpu_custom_call.1} parent=0 // pred_region
    _
  $region13: #{tpu_custom_call.1} parent=0 // pred_fallthru
    _
  // Predicated region
  $region14: #{tpu_custom_call.1} parent=0 // pred_check
    _
  $region15: #{tpu_custom_call.1} parent=0 // pred_check_branch
    %429 = sbr.rel (0) target = $region17
  $region16: #{tpu_custom_call.1} parent=0 // pred_region
    _
  $region17: #{tpu_custom_call.1} parent=0 // pred_fallthru
    _

</llo_original>
